<compile_context>
chip_gen: v5e
topology: v5e:2x2
jax: 0.10.0
libtpu: 0.0.40
codegen_flags: <defaults>
</compile_context>

<pallas_src>
import jax
import jax.numpy as jnp
from jax import lax
from jax.experimental import pallas as pl
from jax.experimental.pallas import tpu as pltpu

HIDDEN_DIM = 32
EPS = 0.1  # FAConv default eps
NUM_LAYERS = 3


# ----------------------------------------------------------------------------- helpers
def _round_up(v, m):
    return ((v + m - 1) // m) * m


def _pick_strip(num_nodes, max_strip):
    n8 = _round_up(max(num_nodes, 8), 8)
    tr = min(_round_up(max_strip, 8), n8)
    n_pad = _round_up(n8, tr)
    return tr, n_pad


def _vmem_budget():
    """Generation-aware usable-VMEM budget (bytes): 0.75 * per-core capacity."""
    try:
        cap = int(pltpu.get_tpu_info().vmem_capacity_bytes)
    except Exception:
        cap = 64 << 20  # conservative default (v7x per-TensorCore VMEM)
    return int(0.75 * cap), cap


def _build_dense_adj(edge_index, num_nodes, n_pad, dtype):
    """gcn_norm (with self-loops) densified at padded size: A_hat[dst, src]."""
    src, dst = edge_index[0], edge_index[1]
    loop = jnp.arange(num_nodes, dtype=src.dtype)
    src = jnp.concatenate([src, loop])
    dst = jnp.concatenate([dst, loop])
    w = jnp.ones(src.shape[0], jnp.float32)
    deg = jnp.zeros((num_nodes,), jnp.float32).at[dst].add(w)
    dinv = jnp.where(deg > 0, lax.rsqrt(deg), 0.0)
    norm = dinv[src] * w * dinv[dst]
    adj = jnp.zeros((n_pad, n_pad), jnp.float32).at[dst, src].add(norm)
    return adj.astype(dtype)


# --------------------------------------------------------- fused 3-layer FAConv kernel
def _make_fused_kernel(tr_rows, eps):
    def kernel(x0_ref, wl_ref, wr_ref, adj_hbm, out_ref,
               adj_vmem, xc, xcb, xn, tl_row, dma_sem):
        l = pl.program_id(0)          # layer index (outer, sequential)
        i = pl.program_id(1)          # dst-row strip index (inner, sequential)
        row0 = pl.multiple_of(i * tr_rows, 8)

        # One-time DMA: bf16 adjacency HBM -> single-buffered VMEM scratch (read once).
        @pl.when((l == 0) & (i == 0))
        def _load_adj():
            cp = pltpu.make_async_copy(adj_hbm, adj_vmem, dma_sem)
            cp.start()
            cp.wait()

        # Per-layer init: refresh the "current x" buffers and the alpha_l source-score row.
        @pl.when(i == 0)
        def _layer_init():
            @pl.when(l == 0)
            def _():
                xc[...] = x0_ref[...]

            @pl.when(l > 0)
            def _():
                xc[...] = xn[...]

            xcb[...] = xc[...].astype(jnp.bfloat16)
            # alpha_l[src] = x[src] . w_l  -> lane-major [1, N] row via a transposed-B
            # matmul (q @ k.T pattern); row 0 of the [8, D] weight pack is att_l.
            scores = lax.dot_general(
                wl_ref[...], xc[...],
                dimension_numbers=(((1,), (1,)), ((), ())),
                preferred_element_type=jnp.float32)               # [8, N]
            tl_row[...] = jnp.tanh(scores[0:1, :])

        # Per-strip FAConv.
        x_strip = xc[pl.ds(row0, tr_rows), :]                      # [TR, D] f32
        t_r = jnp.tanh(jnp.dot(x_strip, wr_ref[...],
                               preferred_element_type=jnp.float32))  # [TR, 1]
        t_l = tl_row[...]                                          # [1, N]
        # Exact identity: tanh(a+b) = (tanh a + tanh b) / (1 + tanh a * tanh b)
        # -> O(N^2) work stays on the VPU instead of multi-pass EUP tanh.
        alpha = (t_r + t_l) / (1.0 + t_r * t_l)                    # [TR, N] f32
        adj_strip = adj_vmem[pl.ds(row0, tr_rows), :].astype(jnp.float32)
        msg = (adj_strip * alpha).astype(jnp.bfloat16)             # bf16 MXU operand
        res = (jnp.dot(msg, xcb[...], preferred_element_type=jnp.float32)
               + eps * x0_ref[pl.ds(row0, tr_rows), :])            # [TR, D] f32

        @pl.when(l < NUM_LAYERS - 1)
        def _():
            xn[pl.ds(row0, tr_rows), :] = res

        @pl.when(l == NUM_LAYERS - 1)
        def _():
            out_ref[pl.ds(row0, tr_rows), :] = res

    return kernel


def _fused_forward(x0, w_l, w_r, adj, *, tr, vmem_bytes):
    n_pad, d = x0.shape
    n_strips = n_pad // tr

    # [3, 8, D] weight pack: sublane-row 0 = att_l of that layer (rest zero), used as the
    # lhs of the transposed-B score matmul.  [3, D, 1] column for the att_r projection.
    wl_pack = jnp.zeros((NUM_LAYERS, 8, d), jnp.float32).at[:, 0, :].set(w_l[:, :, 0])
    wr_col = w_r.astype(jnp.float32)

    return pl.pallas_call(
        _make_fused_kernel(tr, EPS),
        out_shape=jax.ShapeDtypeStruct((n_pad, d), jnp.float32),
        grid_spec=pltpu.PrefetchScalarGridSpec(
            num_scalar_prefetch=0,
            grid=(NUM_LAYERS, n_strips),
            in_specs=[
                pl.BlockSpec((n_pad, d), lambda l, i: (0, 0)),         # x0 (resident)
                pl.BlockSpec((None, 8, d), lambda l, i: (l, 0, 0)),    # att_l pack / layer
                pl.BlockSpec((None, d, 1), lambda l, i: (l, 0, 0)),    # att_r col / layer
                pl.BlockSpec(memory_space=pl.ANY),                     # adj stays in HBM
            ],
            out_specs=pl.BlockSpec((n_pad, d), lambda l, i: (0, 0)),   # resident output
            scratch_shapes=[
                pltpu.VMEM((n_pad, n_pad), jnp.bfloat16),   # adjacency (resident, 1 copy)
                pltpu.VMEM((n_pad, d), jnp.float32),        # xc: current layer input
                pltpu.VMEM((n_pad, d), jnp.bfloat16),       # xcb: bf16 copy for the MXU
                pltpu.VMEM((n_pad, d), jnp.float32),        # xn: next layer input
                pltpu.VMEM((1, n_pad), jnp.float32),        # tanh(alpha_l) source row
                pltpu.SemaphoreType.DMA,
            ],
        ),
        compiler_params=pltpu.CompilerParams(
            # Both axes "arbitrary": layer carry + cross-strip VMEM state require a fully
            # sequential visit order on one core.
            dimension_semantics=("arbitrary", "arbitrary"),
            vmem_limit_bytes=vmem_bytes,
        ),
        cost_estimate=pl.CostEstimate(
            flops=NUM_LAYERS * (2 * n_pad * n_pad * d + 8 * n_pad * n_pad),
            transcendentals=NUM_LAYERS * n_pad * n_pad,
            bytes_accessed=2 * n_pad * n_pad + 8 * n_pad * d,
        ),
    )(x0, wl_pack, wr_col, adj)


# ----------------------------------------------- streamed per-layer fallback (large N)
def _faconv_strip_kernel(x_ref, x0_ref, tl_ref, tr_ref, adj_ref, out_ref):
    t_l = tl_ref[...]                                     # [1, N]  tanh(alpha_l)
    t_r = tr_ref[...]                                     # [TR, 1] tanh(alpha_r)
    alpha = (t_r + t_l) / (1.0 + t_r * t_l)               # exact tanh(a+b) identity
    msg = (adj_ref[...].astype(jnp.float32) * alpha).astype(jnp.bfloat16)
    out_ref[...] = (
        jnp.dot(msg, x_ref[...].astype(jnp.bfloat16), preferred_element_type=jnp.float32)
        + EPS * x0_ref[...])


def _faconv_layer_streamed(x, x0, adj, w_l, w_r, *, tr, vmem_bytes):
    n_pad, d = x.shape
    n_strips = n_pad // tr

    # O(N*D) projections + O(N) tanh hoisted out of the strip loop (plain-XLA glue).
    t_l = jnp.tanh(jnp.dot(x, w_l)).reshape(1, n_pad)      # source scores, lane-major row
    t_r = jnp.tanh(jnp.dot(x, w_r))                        # target scores, column

    return pl.pallas_call(
        _faconv_strip_kernel,
        out_shape=jax.ShapeDtypeStruct((n_pad, d), jnp.float32),
        grid_spec=pltpu.PrefetchScalarGridSpec(
            num_scalar_prefetch=0,
            grid=(n_strips,),
            in_specs=[
                pl.BlockSpec((n_pad, d), lambda i: (0, 0)),     # x (resident)
                pl.BlockSpec((tr, d), lambda i: (i, 0)),        # x0 strip
                pl.BlockSpec((1, n_pad), lambda i: (0, 0)),     # tanh(alpha_l) row
                pl.BlockSpec((tr, 1), lambda i: (i, 0)),        # tanh(alpha_r) strip
                pl.BlockSpec((tr, n_pad), lambda i: (i, 0)),    # bf16 adj strip (streamed)
            ],
            out_specs=pl.BlockSpec((tr, d), lambda i: (i, 0)),
        ),
        compiler_params=pltpu.CompilerParams(
            dimension_semantics=("parallel",),
            vmem_limit_bytes=vmem_bytes,
        ),
        cost_estimate=pl.CostEstimate(
            flops=2 * n_pad * n_pad * d + 8 * n_pad * n_pad,
            transcendentals=n_pad * n_pad,
            bytes_accessed=2 * n_pad * n_pad + 12 * n_pad * d,
        ),
    )(x, x0, t_l, t_r, adj)


# --------------------------------------------------------------------------- wrapper
def cell_encoder_cnv(node_type, edge_index, batch, params, num_graphs, *,
                     max_strip=None, force_streaming=False):
    n = node_type.shape[0]
    d = params["emb"].shape[1]

    budget, vmem_cap = _vmem_budget()
    if max_strip is None:
        max_strip = 512 if vmem_cap >= (100 << 20) else 256
    tr, n_pad = _pick_strip(n, max_strip)

    # bf16 adjacency built directly at padded size (no extra f32 re-pad round-trip).
    adj = _build_dense_adj(edge_index, n, n_pad, jnp.bfloat16)

    # Embedding lookup as an XLA gather, padded to n_pad rows.
    x0 = jnp.zeros((n_pad, d), jnp.float32).at[:n, :].set(
        params["emb"][node_type].astype(jnp.float32))

    w_l = jnp.stack([params["att_l1"], params["att_l2"], params["att_l3"]]).astype(jnp.float32)
    w_r = jnp.stack([params["att_r1"], params["att_r2"], params["att_r3"]]).astype(jnp.float32)

    # Conservative working-set estimate for the fused (adjacency-resident) kernel.
    fused_bytes = (2 * n_pad * n_pad            # resident bf16 adjacency scratch
                   + 10 * n_pad * d * 4         # x0/out blocks + xc/xn/xcb scratches
                   + 8 * tr * n_pad * 4         # alpha / msg temporaries
                   + (1 << 20))

    if (not force_streaming) and fused_bytes <= budget:
        x3 = _fused_forward(x0, w_l, w_r, adj, tr=tr, vmem_bytes=budget)
    else:
        # TODO(synk): add a source-chunk ("arbitrary" K) grid axis with an f32 accumulator
        # so VMEM stays bounded for very large graphs instead of [TR, N_pad] strips.
        x = x0
        for l in range(NUM_LAYERS):
            x = _faconv_layer_streamed(x, x0, adj, w_l[l], w_r[l], tr=tr, vmem_bytes=budget)
        x3 = x

    # global_mean_pool: tiny segment mean over the real (unpadded) rows; plain-JAX glue.
    sums = jnp.zeros((num_graphs, d), jnp.float32).at[batch].add(x3[:n])
    counts = jnp.zeros((num_graphs,), jnp.float32).at[batch].add(1.0)
    return sums / jnp.maximum(counts, 1.0)[:, None]


# ------------------------------------------------------------------------- reference
def _reference(node_type, edge_index, batch, params, num_graphs):
    """Pure-JAX f32 reference of the same dense FAConv formulation."""
    n = node_type.shape[0]
    adj = _build_dense_adj(edge_index, n, n, jnp.float32)
    x0 = params["emb"][node_type].astype(jnp.float32)

    def fa(x, wl, wr):
        al = x @ wl                               # [N, 1]
        ar = x @ wr                               # [N, 1]
        alpha = jnp.tanh(ar + al.T)               # alpha[dst, src]
        return (adj * alpha) @ x + EPS * x0

    x1 = fa(x0, params["att_l1"], params["att_r1"])
    x2 = fa(x1, params["att_l2"], params["att_r2"])
    x3 = fa(x2, params["att_l3"], params["att_r3"])
    sums = jnp.zeros((num_graphs, x3.shape[1]), jnp.float32).at[batch].add(x3)
    counts = jnp.zeros((num_graphs,), jnp.float32).at[batch].add(1.0)
    return sums / counts[:, None]


if __name__ == "__main__":
    D = HIDDEN_DIM
    key = jax.random.PRNGKey(0)
    k = jax.random.split(key, 8)

    # Deterministic parameters: Embedding(2, D) table; att_l/att_r: Linear(D, 1, no bias).
    params = {
        "emb":    jax.random.normal(k[0], (2, D), jnp.float32),
        "att_l1": jax.random.normal(k[1], (D, 1), jnp.float32) * 0.2,
        "att_r1": jax.random.normal(k[2], (D, 1), jnp.float32) * 0.2,
        "att_l2": jax.random.normal(k[3], (D, 1), jnp.float32) * 0.2,
        "att_r2": jax.random.normal(k[4], (D, 1), jnp.float32) * 0.2,
        "att_l3": jax.random.normal(k[5], (D, 1), jnp.float32) * 0.2,
        "att_r3": jax.random.normal(k[6], (D, 1), jnp.float32) * 0.2,
    }

    # Small synthetic batched graph: 2 graphs x 32 nodes, bidirectional ring edges.
    NPG, G = 32, 2
    N = NPG * G
    node_type = jax.random.randint(k[7], (N,), 0, 2, dtype=jnp.int32)
    edges = []
    for g in range(G):
        base = g * NPG
        for i in range(NPG):
            a, b = base + i, base + (i + 1) % NPG
            edges.append((a, b))
            edges.append((b, a))
    edge_index = jnp.asarray(edges, dtype=jnp.int32).T                  # [2, 128]
    batch = jnp.asarray([g for g in range(G) for _ in range(NPG)], dtype=jnp.int32)

    ref = _reference(node_type, edge_index, batch, params, G)

    # Fused-resident path (max_strip=32 -> 2 dst strips, exercises layer/strip carry).
    out = cell_encoder_cnv(node_type, edge_index, batch, params, G, max_strip=32)
    out = jax.block_until_ready(out)
    assert out.shape == (G, D)
    assert jnp.allclose(out, ref, rtol=2e-2, atol=2e-2), "fused kernel/reference mismatch"

    # Streamed per-layer fallback path (forced), same tolerance.
    out_s = cell_encoder_cnv(node_type, edge_index, batch, params, G,
                             max_strip=32, force_streaming=True)
    out_s = jax.block_until_ready(out_s)
    assert jnp.allclose(out_s, ref, rtol=2e-2, atol=2e-2), "streamed kernel/reference mismatch"

    print("KERNEL_OK")
</pallas_src>

<mosaic_0001>
module attributes {stable_mosaic.version = 11 : i64} {
  func.func @kernel(%arg0: i32, %arg1: i32, %arg2: memref<64x32xf32, #tpu.memory_space<vmem>>, %arg3: memref<1x8x32xf32, #tpu.memory_space<vmem>>, %arg4: memref<1x32x1xf32, #tpu.memory_space<vmem>>, %arg5: memref<64x64xbf16, #tpu.memory_space<any>>, %arg6: memref<64x32xf32, #tpu.memory_space<vmem>>, %arg7: memref<64x64xbf16, #tpu.memory_space<vmem>>, %arg8: memref<64x32xf32, #tpu.memory_space<vmem>>, %arg9: memref<64x32xbf16, #tpu.memory_space<vmem>>, %arg10: memref<64x32xf32, #tpu.memory_space<vmem>>, %arg11: memref<1x64xf32, #tpu.memory_space<vmem>>, %arg12: memref<!tpu.dma_semaphore, #tpu.memory_space<semaphore_mem>>) attributes {dimension_semantics = [#tpu.dimension_semantics<arbitrary>, #tpu.dimension_semantics<arbitrary>], iteration_bounds = array<i64: 3, 2>, scalar_prefetch = 0 : i64, scratch_operands = 6 : i64, tpu.core_type = #tpu.core_type<tc>, window_params = [{pipeline_mode = #tpu.pipeline_mode<synchronous>, transform_indices = @transform_0, window_bounds = array<i64: 64, 32>}, {transform_indices = @transform_1, window_bounds = array<i64: 1, 8, 32>}, {transform_indices = @transform_2, window_bounds = array<i64: 1, 32, 1>}, {}, {pipeline_mode = #tpu.pipeline_mode<synchronous>, transform_indices = @transform_4, window_bounds = array<i64: 64, 32>}]} {
    %c32_i32 = arith.constant 32 : i32
    %0 = arith.muli %arg1, %c32_i32 : i32
    %1 = tpu.assume_multiple %0, 8 : i32
    %c0_i32 = arith.constant 0 : i32
    %2 = arith.cmpi eq, %arg0, %c0_i32 : i32
    %c0_i32_0 = arith.constant 0 : i32
    %3 = arith.cmpi eq, %arg1, %c0_i32_0 : i32
    %4 = arith.andi %2, %3 : i1
    %5 = arith.extui %4 : i1 to i32
    %c0_i32_1 = arith.constant 0 : i32
    %6 = arith.cmpi ne, %5, %c0_i32_1 : i32
    scf.if %6 {
      tpu.enqueue_dma source(%arg5 : memref<64x64xbf16, #tpu.memory_space<any>>) target(%arg7 : memref<64x64xbf16, #tpu.memory_space<vmem>>) target_semaphore(%arg12 : memref<!tpu.dma_semaphore, #tpu.memory_space<semaphore_mem>>)
      tpu.wait_dma2 semaphore(%arg12 : memref<!tpu.dma_semaphore, #tpu.memory_space<semaphore_mem>>) src(%arg5 : memref<64x64xbf16, #tpu.memory_space<any>>) dst(%arg7 : memref<64x64xbf16, #tpu.memory_space<vmem>>)
    } else {
    }
    %c0_i32_2 = arith.constant 0 : i32
    %7 = arith.cmpi eq, %arg1, %c0_i32_2 : i32
    %8 = arith.extui %7 : i1 to i32
    %c0_i32_3 = arith.constant 0 : i32
    %9 = arith.cmpi ne, %8, %c0_i32_3 : i32
    scf.if %9 {
      %c0_i32_19 = arith.constant 0 : i32
      %44 = arith.cmpi eq, %arg0, %c0_i32_19 : i32
      %45 = arith.extui %44 : i1 to i32
      %c0_i32_20 = arith.constant 0 : i32
      %46 = arith.cmpi ne, %45, %c0_i32_20 : i32
      scf.if %46 {
        %c0_35 = arith.constant 0 : index
        %c0_36 = arith.constant 0 : index
        %60 = vector.load %arg2[%c0_35, %c0_36] : memref<64x32xf32, #tpu.memory_space<vmem>>, vector<64x32xf32>
        %c0_37 = arith.constant 0 : index
        %c0_38 = arith.constant 0 : index
        %61 = vector.load %arg8[%c0_37, %c0_38] : memref<64x32xf32, #tpu.memory_space<vmem>>, vector<64x32xf32>
        tpu.vector_store %arg8[%c0_37, %c0_38], %60 {strides = array<i32>} : memref<64x32xf32, #tpu.memory_space<vmem>>, vector<64x32xf32>,
      } else {
      }
      %c0_i32_21 = arith.constant 0 : i32
      %47 = arith.cmpi sgt, %arg0, %c0_i32_21 : i32
      %48 = arith.extui %47 : i1 to i32
      %c0_i32_22 = arith.constant 0 : i32
      %49 = arith.cmpi ne, %48, %c0_i32_22 : i32
      scf.if %49 {
        %c0_35 = arith.constant 0 : index
        %c0_36 = arith.constant 0 : index
        %60 = vector.load %arg10[%c0_35, %c0_36] : memref<64x32xf32, #tpu.memory_space<vmem>>, vector<64x32xf32>
        %c0_37 = arith.constant 0 : index
        %c0_38 = arith.constant 0 : index
        %61 = vector.load %arg8[%c0_37, %c0_38] : memref<64x32xf32, #tpu.memory_space<vmem>>, vector<64x32xf32>
        tpu.vector_store %arg8[%c0_37, %c0_38], %60 {strides = array<i32>} : memref<64x32xf32, #tpu.memory_space<vmem>>, vector<64x32xf32>,
      } else {
      }
      %c0_23 = arith.constant 0 : index
      %c0_24 = arith.constant 0 : index
      %50 = vector.load %arg8[%c0_23, %c0_24] : memref<64x32xf32, #tpu.memory_space<vmem>>, vector<64x32xf32>
      %51 = arith.truncf %50 : vector<64x32xf32> to vector<64x32xbf16>
      %c0_25 = arith.constant 0 : index
      %c0_26 = arith.constant 0 : index
      %52 = vector.load %arg9[%c0_25, %c0_26] : memref<64x32xbf16, #tpu.memory_space<vmem>>, vector<64x32xbf16>
      tpu.vector_store %arg9[%c0_25, %c0_26], %51 {strides = array<i32>} : memref<64x32xbf16, #tpu.memory_space<vmem>>, vector<64x32xbf16>,
      %c0_27 = arith.constant 0 : index
      %c0_28 = arith.constant 0 : index
      %c0_29 = arith.constant 0 : index
      %53 = vector.load %arg3[%c0_27, %c0_28, %c0_29] : memref<1x8x32xf32, #tpu.memory_space<vmem>>, vector<1x8x32xf32>
      %54 = vector.shape_cast %53 : vector<1x8x32xf32> to vector<8x32xf32>
      %c0_30 = arith.constant 0 : index
      %c0_31 = arith.constant 0 : index
      %55 = vector.load %arg8[%c0_30, %c0_31] : memref<64x32xf32, #tpu.memory_space<vmem>>, vector<64x32xf32>
      %cst_32 = arith.constant dense<0.000000e+00> : vector<8x64xf32>
      %56 = tpu.matmul %54, %55, %cst_32 {dimension_numbers = #tpu.dot_dimension_numbers<[1], [1], [0], [0], [0, 0, 1, 0], [], []>} : vector<8x32xf32>, vector<64x32xf32>, vector<8x64xf32> -> vector<8x64xf32>
      %57 = vector.extract_strided_slice %56 {offsets = [0, 0], sizes = [1, 64], strides = [1, 1]} : vector<8x64xf32> to vector<1x64xf32>
      %58 = math.tanh %57 : vector<1x64xf32>
      %c0_33 = arith.constant 0 : index
      %c0_34 = arith.constant 0 : index
      %59 = vector.load %arg11[%c0_33, %c0_34] : memref<1x64xf32, #tpu.memory_space<vmem>>, vector<1x64xf32>
      tpu.vector_store %arg11[%c0_33, %c0_34], %58 {strides = array<i32>} : memref<1x64xf32, #tpu.memory_space<vmem>>, vector<1x64xf32>,
    } else {
    }
    %10 = arith.index_cast %1 : i32 to index
    %c0 = arith.constant 0 : index
    %11 = vector.load %arg8[%10, %c0] : memref<64x32xf32, #tpu.memory_space<vmem>>, vector<32x32xf32>
    %c0_4 = arith.constant 0 : index
    %c0_5 = arith.constant 0 : index
    %c0_6 = arith.constant 0 : index
    %12 = vector.load %arg4[%c0_4, %c0_5, %c0_6] : memref<1x32x1xf32, #tpu.memory_space<vmem>>, vector<1x32x1xf32>
    %13 = vector.shape_cast %12 : vector<1x32x1xf32> to vector<32x1xf32>
    %cst = arith.constant dense<0.000000e+00> : vector<32x1xf32>
    %14 = tpu.matmul %11, %13, %cst {dimension_numbers = #tpu.dot_dimension_numbers<[1], [0], [0], [1], [0, 0, 1, 1], [], []>} : vector<32x32xf32>, vector<32x1xf32>, vector<32x1xf32> -> vector<32x1xf32>
    %15 = math.tanh %14 : vector<32x1xf32>
    %c0_7 = arith.constant 0 : index
    %c0_8 = arith.constant 0 : index
    %16 = vector.load %arg11[%c0_7, %c0_8] : memref<1x64xf32, #tpu.memory_space<vmem>>, vector<1x64xf32>
    %17 = vector.broadcast %15 : vector<32x1xf32> to vector<32x64xf32>
    %18 = vector.broadcast %16 : vector<1x64xf32> to vector<32x64xf32>
    %19 = arith.addf %17, %18 : vector<32x64xf32>
    %20 = vector.broadcast %15 : vector<32x1xf32> to vector<32x64xf32>
    %21 = vector.broadcast %16 : vector<1x64xf32> to vector<32x64xf32>
    %22 = arith.mulf %20, %21 : vector<32x64xf32>
    %cst_9 = arith.constant 1.000000e+00 : f32
    %23 = vector.broadcast %cst_9 : f32 to vector<32x64xf32>
    %24 = arith.addf %23, %22 : vector<32x64xf32>
    %25 = arith.divf %19, %24 : vector<32x64xf32>
    %26 = arith.index_cast %1 : i32 to index
    %c0_10 = arith.constant 0 : index
    %27 = vector.load %arg7[%26, %c0_10] : memref<64x64xbf16, #tpu.memory_space<vmem>>, vector<32x64xbf16>
    %28 = arith.extf %27 : vector<32x64xbf16> to vector<32x64xf32>
    %29 = arith.mulf %28, %25 : vector<32x64xf32>
    %30 = arith.truncf %29 : vector<32x64xf32> to vector<32x64xbf16>
    %c0_11 = arith.constant 0 : index
    %c0_12 = arith.constant 0 : index
    %31 = vector.load %arg9[%c0_11, %c0_12] : memref<64x32xbf16, #tpu.memory_space<vmem>>, vector<64x32xbf16>
    %cst_13 = arith.constant dense<0.000000e+00> : vector<32x32xf32>
    %32 = tpu.matmul %30, %31, %cst_13 {dimension_numbers = #tpu.dot_dimension_numbers<[1], [0], [0], [1], [0, 0, 1, 1], [], []>} : vector<32x64xbf16>, vector<64x32xbf16>, vector<32x32xf32> -> vector<32x32xf32>
    %33 = arith.index_cast %1 : i32 to index
    %c0_14 = arith.constant 0 : index
    %34 = vector.load %arg2[%33, %c0_14] : memref<64x32xf32, #tpu.memory_space<vmem>>, vector<32x32xf32>
    %cst_15 = arith.constant 1.000000e-01 : f32
    %35 = vector.broadcast %cst_15 : f32 to vector<32x32xf32>
    %36 = arith.mulf %35, %34 : vector<32x32xf32>
    %37 = arith.addf %32, %36 : vector<32x32xf32>
    %c2_i32 = arith.constant 2 : i32
    %38 = arith.cmpi slt, %arg0, %c2_i32 : i32
    %39 = arith.extui %38 : i1 to i32
    %c0_i32_16 = arith.constant 0 : i32
    %40 = arith.cmpi ne, %39, %c0_i32_16 : i32
    scf.if %40 {
      %44 = arith.index_cast %1 : i32 to index
      %c0_19 = arith.constant 0 : index
      %45 = vector.load %arg10[%44, %c0_19] : memref<64x32xf32, #tpu.memory_space<vmem>>, vector<32x32xf32>
      tpu.vector_store %arg10[%44, %c0_19], %37 {strides = array<i32>} : memref<64x32xf32, #tpu.memory_space<vmem>>, vector<32x32xf32>,
    } else {
    }
    %c2_i32_17 = arith.constant 2 : i32
    %41 = arith.cmpi eq, %arg0, %c2_i32_17 : i32
    %42 = arith.extui %41 : i1 to i32
    %c0_i32_18 = arith.constant 0 : i32
    %43 = arith.cmpi ne, %42, %c0_i32_18 : i32
    scf.if %43 {
      %44 = arith.index_cast %1 : i32 to index
      %c0_19 = arith.constant 0 : index
      %45 = vector.load %arg6[%44, %c0_19] : memref<64x32xf32, #tpu.memory_space<vmem>>, vector<32x32xf32>
      tpu.vector_store %arg6[%44, %c0_19], %37 {strides = array<i32>} : memref<64x32xf32, #tpu.memory_space<vmem>>, vector<32x32xf32>,
    } else {
    }
    return
  }
  func.func @transform_0(%arg0: i32, %arg1: i32) -> (i32, i32) {
    %c0_i32 = arith.constant 0 : i32
    %c0_i32_0 = arith.constant 0 : i32
    %c0_i32_1 = arith.constant 0 : i32
    return %c0_i32, %c0_i32_0 : i32, i32
  }
  func.func @transform_1(%arg0: i32, %arg1: i32) -> (i32, i32, i32) {
    %c0_i32 = arith.constant 0 : i32
    %c0_i32_0 = arith.constant 0 : i32
    %c0_i32_1 = arith.constant 0 : i32
    return %arg0, %c0_i32, %c0_i32_0 : i32, i32, i32
  }
  func.func @transform_2(%arg0: i32, %arg1: i32) -> (i32, i32, i32) {
    %c0_i32 = arith.constant 0 : i32
    %c0_i32_0 = arith.constant 0 : i32
    %c0_i32_1 = arith.constant 0 : i32
    return %arg0, %c0_i32, %c0_i32_0 : i32, i32, i32
  }
  func.func @transform_4(%arg0: i32, %arg1: i32) -> (i32, i32) {
    %c0_i32 = arith.constant 0 : i32
    %c0_i32_0 = arith.constant 0 : i32
    %c0_i32_1 = arith.constant 0 : i32
    return %c0_i32, %c0_i32_0 : i32, i32
  }
}

</mosaic_0001>

<llo_original>
// kernel: tpu_custom_call.1
$region0: #{tpu_custom_call.1}
  #allocation0 [shape = 'u32[]', space=smem, size = 0x4, offset = 0x4, fixed_abs, tag = 'smem constant byte address 0x4 - core index']
  #allocation1 [shape = 'u32[72,128]{1,0:T(1,128)}', space=vmem, size = 0x9000, scoped, tag = 'internal scratch']
  #allocation2 [shape = 'bf16[64,64]{1,0:T(8,128)(2,1)}', space=vmem, size = 0x4000, scoped, tag = 'scratch operand']
  #allocation3 [shape = 'f32[64,32]{1,0:T(8,128)}', space=vmem, size = 0x8000, scoped, tag = 'scratch operand']
  #allocation4 [shape = 'bf16[64,32]{1,0:T(8,128)(2,1)}', space=vmem, size = 0x4000, scoped, tag = 'scratch operand']
  #allocation5 [shape = 'f32[64,32]{1,0:T(8,128)}', space=vmem, size = 0x8000, scoped, tag = 'scratch operand']
  #allocation6 [shape = 'f32[1,64]{1,0:T(1,128)}', space=vmem, size = 0x200, scoped, tag = 'scratch operand']
  #allocation7 [shape = 's32[1]{0}', space=sflag, size = 0x4, scoped, tag = 'scratch operand']
  #allocation8 [shape = 's32[]', space=sflag, size = 0x4, offset = 0, fixed_abs, tag = 'sflag constant byte address 0x0 - dummy sync flag']
  %s0 = inlined_call_operand.vmem [shape: f32[64,32], index: 0, kind: input, shape index: {}]
  %s1 = inlined_call_operand.vmem [shape: f32[3,8,32], index: 1, kind: input, shape index: {}]
  %s2 = inlined_call_operand.vmem [shape: f32[3,32,1], index: 2, kind: input, shape index: {}]
  %s3 = inlined_call_operand.vmem [shape: bf16[64,64], index: 3, kind: input, shape index: {}]
  %s4 = inlined_call_operand.vmem [shape: f32[64,32], index: 4, kind: output, shape index: {}]
  %s5 = sld [smem:[#allocation0]]
  $region88: #{tpu_custom_call.1} parent=0
    _
  %s7 = ssub.s32 1, %s5
  %s8 = scalar_select 0, %s7, %s5
  loop: start=0, step=1, limit=8
  $region2: #{tpu_custom_call.1} parent=0 // loop_pre_header
    _
  $region3: #{tpu_custom_call.1} parent=0 // loop_header
    %s10 = sphi 0, %s14
    %p11 = scmp.ge.s32.totalorder %s10, 8
    %s17 = sphi 0, %s29
    %s18 = sphi 0, %s25
    %s19 = sphi 0, %s17
    %s20 = sphi 0, %s18
    %s21 = sphi 0, %s19
    %s22 = sphi 0, %s20
    %s30 = sphi 0, %s30
    %s32 = sphi 0, %s30
    %s33 = sphi 0, %s32
    %s47 = sphi 0, %s33
    %s53 = sphi 0, %s55
    %s56 = sphi 0, %s53
    %s57 = sphi 0, %s56
    %s73 = sphi 0, %s57
    %s79 = sphi 0, %s81
    %s82 = sphi 0, %s79
    %s83 = sphi 0, %s82
    %s99 = sphi 0, %s83
    %s103 = sphi 0, %s103
    %s105 = sphi 0, %s103
    %s106 = sphi 0, %s105
    %s120 = sphi 0, %s106
  $region4: #{tpu_custom_call.1} parent=0 // loop_header_branch
    %13 = sbr.rel (%p11) target = $region8
  $region5: #{tpu_custom_call.1} parent=0 // loop_body
    %s15 = ssub.s32 %s10, 1
    %s16 = ssub.s32 %s10, 2
    %s23 = sadd.s32 1, %s18
    %p24 = scmp.ge.s32.totalorder %s23, 2
    %s25 = scalar_select %p24, 0, %s23
    %s26 = sadd.s32 1, %s17
    %s27 = scalar_select %p24, %s26, %s17
    %p28 = scmp.ge.s32.totalorder %s27, 3
    %s29 = scalar_select %p28, 0, %s27
    %s31 = sadd.s32 %s30, 1
    %p34 = scmp.eq.s32.totalorder %s10, 5
    %p35 = scmp.ne.s32.totalorder %s30, %s32
    %p36 = scmp.eq.s32.totalorder %s10, 0
    %p37 = por %p35, %p36
    %p38 = scmp.ne.s32.totalorder %s30, %s32
    %p39 = scmp.eq.s32.totalorder %s15, 5
    %p40 = por %p38, %p39
    %p41 = scmp.ne.s32.totalorder %s32, %s33
    %p42 = scmp.eq.s32.totalorder %s15, 0
    %p43 = por %p41, %p42
    %p44 = scmp.ne.s32.totalorder %s32, %s33
    %p45 = scmp.eq.s32.totalorder %s16, 5
    %p46 = por %p44, %p45
    %p48 = scmp.ne.s32.totalorder %s33, %s47
    %p49 = scmp.eq.s32.totalorder %s16, 0
    %p50 = por %p48, %p49
    %s51 = ssub.s32 %s17, %s29
    %p52 = scmp.eq.s32.totalorder %s51, 0
    %s54 = sadd.s32 %s53, 1
    %s55 = scalar_select %p52, %s53, %s54
    %p58 = pneg %p52
    %p59 = scmp.eq.s32.totalorder %s10, 5
    %p60 = por %p58, %p59
    %p61 = scmp.ne.s32.totalorder %s53, %s56
    %p62 = scmp.eq.s32.totalorder %s10, 0
    %p63 = por %p61, %p62
    %p64 = scmp.ne.s32.totalorder %s53, %s56
    %p65 = scmp.eq.s32.totalorder %s15, 5
    %p66 = por %p64, %p65
    %p67 = scmp.ne.s32.totalorder %s56, %s57
    %p68 = scmp.eq.s32.totalorder %s15, 0
    %p69 = por %p67, %p68
    %p70 = scmp.ne.s32.totalorder %s56, %s57
    %p71 = scmp.eq.s32.totalorder %s16, 5
    %p72 = por %p70, %p71
    %p74 = scmp.ne.s32.totalorder %s57, %s73
    %p75 = scmp.eq.s32.totalorder %s16, 0
    %p76 = por %p74, %p75
    %s77 = ssub.s32 %s17, %s29
    %p78 = scmp.eq.s32.totalorder %s77, 0
    %s80 = sadd.s32 %s79, 1
    %s81 = scalar_select %p78, %s79, %s80
    %p84 = pneg %p78
    %p85 = scmp.eq.s32.totalorder %s10, 5
    %p86 = por %p84, %p85
    %p87 = scmp.ne.s32.totalorder %s79, %s82
    %p88 = scmp.eq.s32.totalorder %s10, 0
    %p89 = por %p87, %p88
    %p90 = scmp.ne.s32.totalorder %s79, %s82
    %p91 = scmp.eq.s32.totalorder %s15, 5
    %p92 = por %p90, %p91
    %p93 = scmp.ne.s32.totalorder %s82, %s83
    %p94 = scmp.eq.s32.totalorder %s15, 0
    %p95 = por %p93, %p94
    %p96 = scmp.ne.s32.totalorder %s82, %s83
    %p97 = scmp.eq.s32.totalorder %s16, 5
    %p98 = por %p96, %p97
    %p100 = scmp.ne.s32.totalorder %s83, %s99
    %p101 = scmp.eq.s32.totalorder %s16, 0
    %p102 = por %p100, %p101
    %s104 = sadd.s32 %s103, 1
    %p107 = scmp.eq.s32.totalorder %s10, 5
    %p108 = scmp.ne.s32.totalorder %s103, %s105
    %p109 = scmp.eq.s32.totalorder %s10, 0
    %p110 = por %p108, %p109
    %p111 = scmp.ne.s32.totalorder %s103, %s105
    %p112 = scmp.eq.s32.totalorder %s15, 5
    %p113 = por %p111, %p112
    %p114 = scmp.ne.s32.totalorder %s105, %s106
    %p115 = scmp.eq.s32.totalorder %s15, 0
    %p116 = por %p114, %p115
    %p117 = scmp.ne.s32.totalorder %s105, %s106
    %p118 = scmp.eq.s32.totalorder %s16, 5
    %p119 = por %p117, %p118
    %p121 = scmp.ne.s32.totalorder %s106, %s120
    %p122 = scmp.eq.s32.totalorder %s16, 0
    %p123 = por %p121, %p122
    %p124 = scmp.le.s32.totalorder 1, %s10
    %p125 = scmp.lt.s32.totalorder %s10, 7
    %p126 = pnand %p124, %p125
    %p127 = pneg %p126
    // Predicated region
    $region9: #{tpu_custom_call.1} parent=5 // pred_check
      _
    $region10: #{tpu_custom_call.1} parent=5 // pred_check_branch
      %129 = sbr.rel (%p126) target = $region12
    $region11: #{tpu_custom_call.1} parent=5 // pred_region
      %s130 = ssub.s32 %s10, 1
      // Predicated region
      $region13: #{tpu_custom_call.1} parent=11 // pred_check
        %p131 = pneg %p43
      $region14: #{tpu_custom_call.1} parent=11 // pred_check_branch
        %133 = sbr.rel (%p131) target = $region16
      $region15: #{tpu_custom_call.1} parent=11 // pred_region
        _
      $region16: #{tpu_custom_call.1} parent=11 // pred_fallthru
        _
    $region12: #{tpu_custom_call.1} parent=5 // pred_fallthru
      _
    %p134 = scmp.lt.s32.totalorder %s10, 6
    // Predicated region
    $region17: #{tpu_custom_call.1} parent=5 // pred_check
      %p135 = pneg %p134
    $region18: #{tpu_custom_call.1} parent=5 // pred_check_branch
      %137 = sbr.rel (%p135) target = $region20
    $region19: #{tpu_custom_call.1} parent=5 // pred_region
      // Predicated region
      $region21: #{tpu_custom_call.1} parent=19 // pred_check
        %p138 = pneg %p63
      $region22: #{tpu_custom_call.1} parent=19 // pred_check_branch
        %140 = sbr.rel (%p138) target = $region24
      $region23: #{tpu_custom_call.1} parent=19 // pred_region
        %p141 = scmp.lt.s32.totalorder %s17, 2
        %s142 = scalar_select %p141, %s17, 2
        %s143 = smul.addr %s142, 8
        %s144 = scalar_lea.vmem %s1, %s143
      $region24: #{tpu_custom_call.1} parent=19 // pred_fallthru
        _
      // Predicated region
      $region25: #{tpu_custom_call.1} parent=19 // pred_check
        %p145 = pneg %p89
      $region26: #{tpu_custom_call.1} parent=19 // pred_check_branch
        %147 = sbr.rel (%p145) target = $region28
      $region27: #{tpu_custom_call.1} parent=19 // pred_region
        %p148 = scmp.lt.s32.totalorder %s17, 2
        %s149 = scalar_select %p148, %s17, 2
        %s150 = smul.addr %s149, 4
        %s151 = smul.addr %s150, 8
        %s152 = scalar_lea.vmem %s2, %s151
      $region28: #{tpu_custom_call.1} parent=19 // pred_fallthru
        _
    $region20: #{tpu_custom_call.1} parent=5 // pred_fallthru
      _
    %p153 = scmp.le.s32.totalorder 1, %s10
    %p154 = scmp.lt.s32.totalorder %s10, 7
    %p155 = pnand %p153, %p154
    %p156 = pneg %p155
    // Predicated region
    $region29: #{tpu_custom_call.1} parent=5 // pred_check
      _
    $region30: #{tpu_custom_call.1} parent=5 // pred_check_branch
      %158 = sbr.rel (%p155) target = $region32
    $region31: #{tpu_custom_call.1} parent=5 // pred_region
      %s159 = ssub.s32 %s10, 1
      %p160 = pneg %p43
      %p161 = pneg %p40
      %p162 = scmp.lt.s32.totalorder %s19, 2
      %s163 = scalar_select %p162, %s19, 2
      %s164 = smul.addr %s163, 8
      %s165 = scalar_lea.vmem %s1, %s164
      %p166 = pneg %p69
      %p167 = pneg %p66
      %p168 = scmp.lt.s32.totalorder %s19, 2
      %s169 = scalar_select %p168, %s19, 2
      %s170 = smul.addr %s169, 4
      %s171 = smul.addr %s170, 8
      %s172 = scalar_lea.vmem %s2, %s171
      %p173 = pneg %p95
      %p174 = pneg %p92
      %p175 = pneg %p116
      %p176 = pneg %p113
      %p177 = scmp.lt.s32.totalorder %s19, 2
      %s178 = scalar_select %p177, %s19, 2
      %s179 = smul.addr %s178, 8
      %s180 = scalar_lea.vmem %s1, %s179
      %p181 = scmp.lt.s32.totalorder %s19, 2
      %s182 = scalar_select %p181, %s19, 2
      %s183 = smul.addr %s182, 4
      %s184 = smul.addr %s183, 8
      %s185 = scalar_lea.vmem %s2, %s184
      %s187 = smul.u32 %s20, 32
      %p188 = scmp.eq.s32.totalorder %s19, 0
      %p189 = scmp.eq.s32.totalorder %s20, 0
      %p190 = pnand %p188, %p189
      %p191 = pneg %p190
      // Predicated region
      $region33: #{tpu_custom_call.1} parent=31 // pred_check
        _
      $region34: #{tpu_custom_call.1} parent=31 // pred_check_branch
        %193 = sbr.rel (%p190) target = $region36
      $region35: #{tpu_custom_call.1} parent=31 // pred_region
        // Predicated region
        $region37: #{tpu_custom_call.1} parent=35 // pred_check
          _
        $region38: #{tpu_custom_call.1} parent=35 // pred_check_branch
          %195 = sbr.rel (0) target = $region40
        $region39: #{tpu_custom_call.1} parent=35 // pred_region
          loop: start=0, step=1, limit=1
          $region41: #{tpu_custom_call.1} parent=39 // loop_pre_header
            _
          $region42: #{tpu_custom_call.1} parent=39 // loop_header
            %s197 = sphi 0, %s201
            %p198 = scmp.ge.s32.totalorder %s197, 1
            %s202 = sphi %s3, %s3
            %s203 = sphi [#allocation2], [#allocation2]
          $region43: #{tpu_custom_call.1} parent=39 // loop_header_branch
            %200 = sbr.rel (%p198) target = $region47
          $region44: #{tpu_custom_call.1} parent=39 // loop_body
            %v204 = vld [vmem:[%s202] sm:$0xff]
            %205 = vst [vmem:[%s203] sm:$0xff] %v204
            %v206 = vld [vmem:[%s202 + $0x8] sm:$0xff]
            %207 = vst [vmem:[%s203 + $0x8] sm:$0xff] %v206
            %v208 = vld [vmem:[%s202 + $0x10] sm:$0xff]
            %209 = vst [vmem:[%s203 + $0x10] sm:$0xff] %v208
            %v210 = vld [vmem:[%s202 + $0x18] sm:$0xff]
            %211 = vst [vmem:[%s203 + $0x18] sm:$0xff] %v210
          $region45: #{tpu_custom_call.1} parent=39 // loop_footer
            %s201 = sadd.s32 1, %s197
          $region46: #{tpu_custom_call.1} parent=39 // loop_footer_branch
            %196 = sbr.rel target = $region42
          $region47: #{tpu_custom_call.1} parent=39 // loop_exit
            _
        $region40: #{tpu_custom_call.1} parent=35 // pred_fallthru
          _
        // Predicated region
        $region48: #{tpu_custom_call.1} parent=35 // pred_check
          _
        $region49: #{tpu_custom_call.1} parent=35 // pred_check_branch
          %213 = sbr.rel target = $region51
        $region50: #{tpu_custom_call.1} parent=35 // pred_region
          _
        $region51: #{tpu_custom_call.1} parent=35 // pred_fallthru
          _
        // Predicated region
        $region52: #{tpu_custom_call.1} parent=35 // pred_check
          _
        $region53: #{tpu_custom_call.1} parent=35 // pred_check_branch
          %216 = sbr.rel (0) target = $region55
        $region54: #{tpu_custom_call.1} parent=35 // pred_region
          %217 = vsyncadd [#allocation7], 512
        $region55: #{tpu_custom_call.1} parent=35 // pred_fallthru
          _
        %s218 = smul.u32 4, 8
        %s219 = smul.u32 %s218, 1
        %s220 = sshll.u32 %s219, 4
        %221 = dma.done [#allocation7], %s220
      $region36: #{tpu_custom_call.1} parent=31 // pred_fallthru
        _
      // Predicated region
      $region56: #{tpu_custom_call.1} parent=31 // pred_check
        %p222 = pneg %p189
      $region57: #{tpu_custom_call.1} parent=31 // pred_check_branch
        %224 = sbr.rel (%p222) target = $region59
      $region58: #{tpu_custom_call.1} parent=31 // pred_region
        // Predicated region
        $region60: #{tpu_custom_call.1} parent=58 // pred_check
          %p225 = pneg %p188
        $region61: #{tpu_custom_call.1} parent=58 // pred_check_branch
          %227 = sbr.rel (%p225) target = $region63
        $region62: #{tpu_custom_call.1} parent=58 // pred_region
          %v228 = vld [vmem:[%s0] sm:$0xff]
          %v229 = vld [vmem:[%s0 + $0x8] sm:$0xff]
          %v230 = vld [vmem:[%s0 + $0x10] sm:$0xff]
          %v231 = vld [vmem:[%s0 + $0x18] sm:$0xff]
          %v232 = vld [vmem:[%s0 + $0x20] sm:$0xff]
          %v233 = vld [vmem:[%s0 + $0x28] sm:$0xff]
          %v234 = vld [vmem:[%s0 + $0x30] sm:$0xff]
          %v235 = vld [vmem:[%s0 + $0x38] sm:$0xff]
          %vm236 = vcmask 261120
          %237 = vst.msk [vmem:[#allocation3] sm:$0xff] %vm236, %v228
          %238 = vst.msk [vmem:[#allocation3 + $0x8] sm:$0xff] %vm236, %v229
          %239 = vst.msk [vmem:[#allocation3 + $0x10] sm:$0xff] %vm236, %v230
          %240 = vst.msk [vmem:[#allocation3 + $0x18] sm:$0xff] %vm236, %v231
          %241 = vst.msk [vmem:[#allocation3 + $0x20] sm:$0xff] %vm236, %v232
          %242 = vst.msk [vmem:[#allocation3 + $0x28] sm:$0xff] %vm236, %v233
          %243 = vst.msk [vmem:[#allocation3 + $0x30] sm:$0xff] %vm236, %v234
          %244 = vst.msk [vmem:[#allocation3 + $0x38] sm:$0xff] %vm236, %v235
        $region63: #{tpu_custom_call.1} parent=58 // pred_fallthru
          _
        %p245 = scmp.gt.s32.totalorder %s19, 0
        // Predicated region
        $region64: #{tpu_custom_call.1} parent=58 // pred_check
          %p246 = pneg %p245
        $region65: #{tpu_custom_call.1} parent=58 // pred_check_branch
          %248 = sbr.rel (%p246) target = $region67
        $region66: #{tpu_custom_call.1} parent=58 // pred_region
          %v249 = vld [vmem:[#allocation5] sm:$0xff]
          %v250 = vld [vmem:[#allocation5 + $0x8] sm:$0xff]
          %v251 = vld [vmem:[#allocation5 + $0x10] sm:$0xff]
          %v252 = vld [vmem:[#allocation5 + $0x18] sm:$0xff]
          %v253 = vld [vmem:[#allocation5 + $0x20] sm:$0xff]
          %v254 = vld [vmem:[#allocation5 + $0x28] sm:$0xff]
          %v255 = vld [vmem:[#allocation5 + $0x30] sm:$0xff]
          %v256 = vld [vmem:[#allocation5 + $0x38] sm:$0xff]
          %vm257 = vcmask 261120
          %258 = vst.msk [vmem:[#allocation3] sm:$0xff] %vm257, %v249
          %259 = vst.msk [vmem:[#allocation3 + $0x8] sm:$0xff] %vm257, %v250
          %260 = vst.msk [vmem:[#allocation3 + $0x10] sm:$0xff] %vm257, %v251
          %261 = vst.msk [vmem:[#allocation3 + $0x18] sm:$0xff] %vm257, %v252
          %262 = vst.msk [vmem:[#allocation3 + $0x20] sm:$0xff] %vm257, %v253
          %263 = vst.msk [vmem:[#allocation3 + $0x28] sm:$0xff] %vm257, %v254
          %264 = vst.msk [vmem:[#allocation3 + $0x30] sm:$0xff] %vm257, %v255
          %265 = vst.msk [vmem:[#allocation3 + $0x38] sm:$0xff] %vm257, %v256
        $region67: #{tpu_custom_call.1} parent=58 // pred_fallthru
          _
        %v266 = vld [vmem:[#allocation3] sm:$0xff]
        %v267 = vld [vmem:[#allocation3 + $0x8] sm:$0xff]
        %v268 = vld [vmem:[#allocation3 + $0x10] sm:$0xff]
        %v269 = vld [vmem:[#allocation3 + $0x18] sm:$0xff]
        %v270 = vld [vmem:[#allocation3 + $0x20] sm:$0xff]
        %v271 = vld [vmem:[#allocation3 + $0x28] sm:$0xff]
        %v272 = vld [vmem:[#allocation3 + $0x30] sm:$0xff]
        %v273 = vld [vmem:[#allocation3 + $0x38] sm:$0xff]
        %v274 = vpack.c.bf16 %v266, %v266
        %v275 = vpack.c.bf16 %v267, %v267
        %v276 = vpack.c.bf16 %v268, %v268
        %v277 = vpack.c.bf16 %v269, %v269
        %v278 = vpack.c.bf16 %v270, %v270
        %v279 = vpack.c.bf16 %v271, %v271
        %v280 = vpack.c.bf16 %v272, %v272
        %v281 = vpack.c.bf16 %v273, %v273
        %vm282 = vcmask 257024
        %283 = vst.msk [vmem:[#allocation4] sm:$0xf] %vm282, %v274
        %284 = vst.msk [vmem:[#allocation4 + $0x4] sm:$0xf] %vm282, %v275
        %285 = vst.msk [vmem:[#allocation4 + $0x8] sm:$0xf] %vm282, %v276
        %286 = vst.msk [vmem:[#allocation4 + $0xc] sm:$0xf] %vm282, %v277
        %287 = vst.msk [vmem:[#allocation4 + $0x10] sm:$0xf] %vm282, %v278
        %288 = vst.msk [vmem:[#allocation4 + $0x14] sm:$0xf] %vm282, %v279
        %289 = vst.msk [vmem:[#allocation4 + $0x18] sm:$0xf] %vm282, %v280
        %290 = vst.msk [vmem:[#allocation4 + $0x1c] sm:$0xf] %vm282, %v281
        %v291 = vld [vmem:[%s180] sm:$0xff]
        %v292 = vld [vmem:[#allocation3] sm:$0xff]
        %v293 = vld [vmem:[#allocation3 + $0x8] sm:$0xff]
        %v294 = vld [vmem:[#allocation3 + $0x10] sm:$0xff]
        %v295 = vld [vmem:[#allocation3 + $0x18] sm:$0xff]
        %v296 = vld [vmem:[#allocation3 + $0x20] sm:$0xff]
        %v297 = vld [vmem:[#allocation3 + $0x28] sm:$0xff]
        %v298 = vld [vmem:[#allocation3 + $0x30] sm:$0xff]
        %v299 = vld [vmem:[#allocation3 + $0x38] sm:$0xff]
        %vm300 = vcmask 261120
        %v302 = vsel %vm300, %v291, 0
        %v305 = vsel %vm300, %v292, 0
        %v308 = vsel %vm300, %v293, 0
        %v311 = vsel %vm300, %v294, 0
        %v314 = vsel %vm300, %v295, 0
        %v317 = vsel %vm300, %v296, 0
        %v320 = vsel %vm300, %v297, 0
        %v323 = vsel %vm300, %v298, 0
        %v326 = vsel %vm300, %v299, 0
        %328 = vmatpush.xpose.msra.mxu0 0.0
        %329 = vmatpush.xpose.msra.mxu0 0.0
        %330 = vmatpush.xpose.msra.mxu0 0.0
        %331 = vmatpush.xpose.msra.mxu0 0.0
        %332 = vmatpush.xpose.msra.mxu0 0.0
        %333 = vmatpush.xpose.msra.mxu0 0.0
        %334 = vmatpush.xpose.msra.mxu0 0.0
        %335 = vmatpush.xpose.msra.mxu0 0.0
        %336 = vmatpush.xpose.msra.mxu0 %v326
        %337 = vmatpush.xpose.msra.mxu0 %v323
        %338 = vmatpush.xpose.msra.mxu0 %v320
        %339 = vmatpush.xpose.msra.mxu0 %v317
        %340 = vmatpush.xpose.msra.mxu0 %v314
        %341 = vmatpush.xpose.msra.mxu0 %v311
        %342 = vmatpush.xpose.msra.mxu0 %v308
        %343 = vmatpush.xpose.msra.mxu0 %v305
        %344 = vmatmul.f32.gmra.mxu0 %v302
        %v345 = vpop.f32.mrf.mxu0
        %v346 = vadd.f32 0.0, %v345
        %347 = vdwg.mxu0
        %v348 = vtanh.pop %v346
        %vm349 = vcmask 516096
        %350 = vst.msk [vmem:[#allocation6] sm:$0x1] %vm349, %v348
      $region59: #{tpu_custom_call.1} parent=31 // pred_fallthru
        _
      %s351 = scalar_lea.vmem [#allocation3], %s187
      %v352 = vld [vmem:[%s351] sm:$0xff]
      %v353 = vld [vmem:[%s351 + $0x8] sm:$0xff]
      %v354 = vld [vmem:[%s351 + $0x10] sm:$0xff]
      %v355 = vld [vmem:[%s351 + $0x18] sm:$0xff]
      %v356 = vld [vmem:[%s185] sm:$0xff]
      %v357 = vld [vmem:[%s185 + $0x8] sm:$0xff]
      %v358 = vld [vmem:[%s185 + $0x10] sm:$0xff]
      %v359 = vld [vmem:[%s185 + $0x18] sm:$0xff]
      %vm360 = vcmask 261120
      %v362 = vsel %vm360, %v352, 0
      %v365 = vsel %vm360, %v353, 0
      %v368 = vsel %vm360, %v354, 0
      %v371 = vsel %vm360, %v355, 0
      %373 = vmatpush.msra.mxu0 0.0
      %374 = vmatpush.msra.mxu0 0.0
      %375 = vmatpush.msra.mxu0 0.0
      %376 = vmatpush.msra.mxu0 0.0
      %377 = vmatpush.msra.mxu0 0.0
      %378 = vmatpush.msra.mxu0 0.0
      %379 = vmatpush.msra.mxu0 0.0
      %380 = vmatpush.msra.mxu0 0.0
      %381 = vmatpush.msra.mxu0 0.0
      %382 = vmatpush.msra.mxu0 0.0
      %383 = vmatpush.msra.mxu0 0.0
      %384 = vmatpush.msra.mxu0 0.0
      %385 = vmatpush.msra.mxu0 %v359
      %386 = vmatpush.msra.mxu0 %v358
      %387 = vmatpush.msra.mxu0 %v357
      %388 = vmatpush.msra.mxu0 %v356
      %389 = vmatmul.f32.gmra.mxu0 %v362
      %v390 = vpop.f32.mrf.mxu0
      %v391 = vadd.f32 0.0, %v390
      %392 = vmatmul.f32.gmra.mxu0 %v365
      %v393 = vpop.f32.mrf.mxu0
      %v394 = vadd.f32 0.0, %v393
      %395 = vmatmul.f32.gmra.mxu0 %v368
      %v396 = vpop.f32.mrf.mxu0
      %v397 = vadd.f32 0.0, %v396
      %398 = vmatmul.f32.gmra.mxu0 %v371
      %v399 = vpop.f32.mrf.mxu0
      %v400 = vadd.f32 0.0, %v399
      %401 = vdwg.mxu0
      %v402 = vtanh.pop %v391
      %v403 = vtanh.pop %v394
      %v404 = vtanh.pop %v397
      %v405 = vtanh.pop %v400
      %v406 = vld [vmem:[#allocation6] sm:$0x1]
      %408 = vset.pattern.permute.xlu0 0
      %409 = vperm.xlu0 %408, %v402
      %v410 = vpop.permute.xlu0 %409
      %413 = vset.pattern.permute.xlu0 0
      %414 = vperm.xlu0 %413, %v403
      %v415 = vpop.permute.xlu0 %414
      %418 = vset.pattern.permute.xlu0 0
      %419 = vperm.xlu0 %418, %v404
      %v420 = vpop.permute.xlu0 %419
      %423 = vset.pattern.permute.xlu0 0
      %424 = vperm.xlu0 %423, %v405
      %v425 = vpop.permute.xlu0 %424
      %v428 = vperm.slane %v406, 0
      %v430 = vadd.f32 %v410, %v428
      %v431 = vadd.f32 %v415, %v428
      %v432 = vadd.f32 %v420, %v428
      %v433 = vadd.f32 %v425, %v428
      %v434 = vmul.f32 %v410, %v428
      %v435 = vmul.f32 %v415, %v428
      %v436 = vmul.f32 %v420, %v428
      %v437 = vmul.f32 %v425, %v428
      %v438 = vadd.f32 %v434, 1.0
      %v439 = vadd.f32 %v435, 1.0
      %v440 = vadd.f32 %v436, 1.0
      %v441 = vadd.f32 %v437, 1.0
      %v442 = vrcp.pop %v438
      %v443 = vmul.f32 %v438, %v442
      %v444 = vsub.f32 1.0, %v443
      %v445 = vmul.f32 %v442, %v444
      %v446 = vadd.f32 %v442, %v445
      %vm447 = vweird.f32 %v438
      %vm448 = vweird.f32 %v442
      %vm449 = vmor %vm447, %vm448
      %v450 = vsel %vm449, %v442, %v446
      %v451 = vand.u32 2147483647, %v438
      %vm452 = vcmp.eq.f32.partialorder %v451, 8.507059e+37
      %v453 = vand.u32 %v438, 2147483648
      %v454 = vor.u32 1.1754944e-38, %v453
      %v455 = vsel %vm452, %v454, %v450
      %v456 = vmul.f32 %v430, %v455
      %v457 = vrcp.pop %v439
      %v458 = vmul.f32 %v439, %v457
      %v459 = vsub.f32 1.0, %v458
      %v460 = vmul.f32 %v457, %v459
      %v461 = vadd.f32 %v457, %v460
      %vm462 = vweird.f32 %v439
      %vm463 = vweird.f32 %v457
      %vm464 = vmor %vm462, %vm463
      %v465 = vsel %vm464, %v457, %v461
      %v466 = vand.u32 2147483647, %v439
      %vm467 = vcmp.eq.f32.partialorder %v466, 8.507059e+37
      %v468 = vand.u32 %v439, 2147483648
      %v469 = vor.u32 1.1754944e-38, %v468
      %v470 = vsel %vm467, %v469, %v465
      %v471 = vmul.f32 %v431, %v470
      %v472 = vrcp.pop %v440
      %v473 = vmul.f32 %v440, %v472
      %v474 = vsub.f32 1.0, %v473
      %v475 = vmul.f32 %v472, %v474
      %v476 = vadd.f32 %v472, %v475
      %vm477 = vweird.f32 %v440
      %vm478 = vweird.f32 %v472
      %vm479 = vmor %vm477, %vm478
      %v480 = vsel %vm479, %v472, %v476
      %v481 = vand.u32 2147483647, %v440
      %vm482 = vcmp.eq.f32.partialorder %v481, 8.507059e+37
      %v483 = vand.u32 %v440, 2147483648
      %v484 = vor.u32 1.1754944e-38, %v483
      %v485 = vsel %vm482, %v484, %v480
      %v486 = vmul.f32 %v432, %v485
      %v487 = vrcp.pop %v441
      %v488 = vmul.f32 %v441, %v487
      %v489 = vsub.f32 1.0, %v488
      %v490 = vmul.f32 %v487, %v489
      %v491 = vadd.f32 %v487, %v490
      %vm492 = vweird.f32 %v441
      %vm493 = vweird.f32 %v487
      %vm494 = vmor %vm492, %vm493
      %v495 = vsel %vm494, %v487, %v491
      %v496 = vand.u32 2147483647, %v441
      %vm497 = vcmp.eq.f32.partialorder %v496, 8.507059e+37
      %v498 = vand.u32 %v441, 2147483648
      %v499 = vor.u32 1.1754944e-38, %v498
      %v500 = vsel %vm497, %v499, %v495
      %v501 = vmul.f32 %v433, %v500
      %s502 = sshra.s32 %s187, 3
      %s503 = sand.u32 %s187, 7
      %s504 = smul.addr %s502, 4
      %s505 = scalar_lea.vmem [#allocation2], %s504
      %v506 = vld [vmem:[%s505] sm:$0xf]
      %v507 = vld [vmem:[%s505 + $0x4] sm:$0xf]
      %v508 = vld [vmem:[%s505 + $0x8] sm:$0xf]
      %v509 = vld [vmem:[%s505 + $0xc] sm:$0xf]
      %v510 = vunpack.c.l.bf16 %v506
      %v511 = vunpack.c.l.bf16 %v507
      %v512 = vunpack.c.l.bf16 %v508
      %v513 = vunpack.c.l.bf16 %v509
      %v514 = vmul.f32 %v510, %v456
      %v515 = vmul.f32 %v511, %v471
      %v516 = vmul.f32 %v512, %v486
      %v517 = vmul.f32 %v513, %v501
      %v518 = vpack.c.bf16 %v515, %v514
      %v519 = vpack.c.bf16 %v517, %v516
      %v520 = vld [vmem:[#allocation4] sm:$0xf]
      %v521 = vld [vmem:[#allocation4 + $0x4] sm:$0xf]
      %v522 = vld [vmem:[#allocation4 + $0x8] sm:$0xf]
      %v523 = vld [vmem:[#allocation4 + $0xc] sm:$0xf]
      %v524 = vld [vmem:[#allocation4 + $0x10] sm:$0xf]
      %v525 = vld [vmem:[#allocation4 + $0x14] sm:$0xf]
      %v526 = vld [vmem:[#allocation4 + $0x18] sm:$0xf]
      %v527 = vld [vmem:[#allocation4 + $0x1c] sm:$0xf]
      %s528 = scalar_lea.vmem %s0, %s187
      %v529 = vld [vmem:[%s528] sm:$0xff]
      %v530 = vld [vmem:[%s528 + $0x8] sm:$0xff]
      %v531 = vld [vmem:[%s528 + $0x10] sm:$0xff]
      %v532 = vld [vmem:[%s528 + $0x18] sm:$0xff]
      %v533 = vmul.f32 %v529, 0.1
      %v534 = vmul.f32 %v530, 0.1
      %v535 = vmul.f32 %v531, 0.1
      %v536 = vmul.f32 %v532, 0.1
      %v545 = vunpack.c.l.b16 %v520
      %v546 = vunpack.c.l.b16 %v521
      %v547 = vunpack.c.l.b16 %v522
      %v548 = vunpack.c.l.b16 %v523
      %v549 = vunpack.c.l.b16 %v524
      %v550 = vunpack.c.l.b16 %v525
      %v551 = vunpack.c.l.b16 %v526
      %v552 = vunpack.c.l.b16 %v527
      %v553 = vpack.c.b16 %v546, %v545
      %v554 = vpack.c.b16 %v548, %v547
      %v555 = vpack.c.b16 %v550, %v549
      %v556 = vpack.c.b16 %v552, %v551
      %vm561 = vcmask 523264
      %v563 = vsel %vm561, %v518, 0
      %v566 = vsel %vm561, %v519, 0
      %568 = vmatpush.bf16.msra.mxu0 0
      %569 = vmatpush.bf16.msra.mxu0 0
      %570 = vmatpush.bf16.msra.mxu0 0
      %571 = vmatpush.bf16.msra.mxu0 0
      %572 = vmatpush.bf16.msra.mxu0 %v556
      %573 = vmatpush.bf16.msra.mxu0 %v555
      %574 = vmatpush.bf16.msra.mxu0 %v554
      %575 = vmatpush.bf16.msra.mxu0 %v553
      %576 = vmatmul.bf16.gmra.mxu0 %v563
      %v577 = vpop.f32.mrf.mxu0
      %v578 = vadd.f32 %v533, %v577
      %v579 = vpop.f32.mrf.mxu0
      %v580 = vadd.f32 %v534, %v579
      %581 = vmatmul.bf16.gmra.mxu0 %v566
      %v582 = vpop.f32.mrf.mxu0
      %v583 = vadd.f32 %v535, %v582
      %v584 = vpop.f32.mrf.mxu0
      %v585 = vadd.f32 %v536, %v584
      %586 = vdwg.mxu0
      %p587 = scmp.lt.s32.totalorder %s19, 2
      // Predicated region
      $region68: #{tpu_custom_call.1} parent=31 // pred_check
        %p588 = pneg %p587
      $region69: #{tpu_custom_call.1} parent=31 // pred_check_branch
        %590 = sbr.rel (%p588) target = $region71
      $region70: #{tpu_custom_call.1} parent=31 // pred_region
        %s591 = scalar_lea.vmem [#allocation5], %s187
        %592 = vst.msk [vmem:[%s591] sm:$0xff] %vm360, %v578
        %593 = vst.msk [vmem:[%s591 + $0x8] sm:$0xff] %vm360, %v580
        %594 = vst.msk [vmem:[%s591 + $0x10] sm:$0xff] %vm360, %v583
        %595 = vst.msk [vmem:[%s591 + $0x18] sm:$0xff] %vm360, %v585
      $region71: #{tpu_custom_call.1} parent=31 // pred_fallthru
        _
      %p596 = scmp.eq.s32.totalorder %s19, 2
      // Predicated region
      $region72: #{tpu_custom_call.1} parent=31 // pred_check
        %p597 = pneg %p596
      $region73: #{tpu_custom_call.1} parent=31 // pred_check_branch
        %599 = sbr.rel (%p597) target = $region75
      $region74: #{tpu_custom_call.1} parent=31 // pred_region
        %s600 = scalar_lea.vmem %s4, %s187
        %601 = vst.msk [vmem:[%s600] sm:$0xff] %vm360, %v578
        %602 = vst.msk [vmem:[%s600 + $0x8] sm:$0xff] %vm360, %v580
        %603 = vst.msk [vmem:[%s600 + $0x10] sm:$0xff] %vm360, %v583
        %604 = vst.msk [vmem:[%s600 + $0x18] sm:$0xff] %vm360, %v585
      $region75: #{tpu_custom_call.1} parent=31 // pred_fallthru
        _
      // Predicated region
      $region76: #{tpu_custom_call.1} parent=31 // pred_check
        %p605 = pneg %p113
      $region77: #{tpu_custom_call.1} parent=31 // pred_check_branch
        %607 = sbr.rel (%p605) target = $region79
      $region78: #{tpu_custom_call.1} parent=31 // pred_region
        _
      $region79: #{tpu_custom_call.1} parent=31 // pred_fallthru
        _
      // Predicated region
      $region80: #{tpu_custom_call.1} parent=31 // pred_check
        %p608 = pneg %p113
      $region81: #{tpu_custom_call.1} parent=31 // pred_check_branch
        %610 = sbr.rel (%p608) target = $region83
      $region82: #{tpu_custom_call.1} parent=31 // pred_region
        _
      $region83: #{tpu_custom_call.1} parent=31 // pred_fallthru
        _
    $region32: #{tpu_custom_call.1} parent=5 // pred_fallthru
      _
    %p611 = scmp.le.s32.totalorder 2, %s10
    // Predicated region
    $region84: #{tpu_custom_call.1} parent=5 // pred_check
      %p612 = pneg %p611
    $region85: #{tpu_custom_call.1} parent=5 // pred_check_branch
      %614 = sbr.rel (%p612) target = $region87
    $region86: #{tpu_custom_call.1} parent=5 // pred_region
      %s615 = ssub.s32 %s10, 2
    $region87: #{tpu_custom_call.1} parent=5 // pred_fallthru
      _
  $region6: #{tpu_custom_call.1} parent=0 // loop_footer
    %s14 = sadd.s32 1, %s10
  $region7: #{tpu_custom_call.1} parent=0 // loop_footer_branch
    %9 = sbr.rel target = $region3
  $region8: #{tpu_custom_call.1} parent=0 // loop_exit
    _
  %616 = vsyncmov [#allocation7]
  %s617 = vpop.sfrf %616
  %p618 = scmp.eq.s32.totalorder %s617, 0
  %p619 = pneg %p618
  %621 = shalt.err (%p619)

</llo_original>
